<compile_context>
chip_gen: v6e
topology: v6e:2x2x1
jax: 0.10.0
libtpu: 0.0.40
codegen_flags: <defaults>
</compile_context>

<pallas_src>
import functools

import jax
import jax.numpy as jnp
from jax import lax
from jax.experimental import pallas as pl
from jax.experimental.pallas import tpu as pltpu


LANE = 128
SUBLANE = 8
TARGET_BLOCK_BYTES = 4 * 1024 * 1024   # ~4 MiB streamed per input block
CHUNK_ROWS = 512                        # in-kernel fold granularity (multiple of 8)


def _mae_partial_sum_kernel(pred_ref, target_ref, acc_ref, *,
                            chunk, rows_total, blocks_per_core, need_row_mask):
    """Accumulates sum(|pred - target|) of this core's row-blocks into acc_ref.

    acc_ref is the (8, 128) output block for core-split index c; it is resident
    across the inner ("arbitrary") grid axis, i.e. it doubles as the VMEM
    accumulator (init at i == 0, auto write-back when c changes).
    """
    c = pl.program_id(0)   # core-split index ("parallel": one per TC on v7x)
    i = pl.program_id(1)   # row-block within this core's range

    @pl.when(i == 0)
    def _():
        acc_ref[...] = jnp.zeros_like(acc_ref)

    block_rows = pred_ref.shape[0]
    # Global (unclamped) block index -> first global row of this block.  Used
    # only for the validity mask, so the clamped duplicate block (odd block
    # count on the 2-way split) and the ragged last block contribute zero.
    row0 = (c * blocks_per_core + i) * block_rows

    def accum(base, nrows):
        # Fold an (nrows, 128) sub-slice into the (8, 128) accumulator using
        # only element-wise VPU work; no cross-lane/sublane reduce in-kernel.
        p = pred_ref[pl.ds(base, nrows), :].astype(jnp.float32)
        t = target_ref[pl.ds(base, nrows), :].astype(jnp.float32)
        d = jnp.abs(p - t)
        if need_row_mask:
            rid = row0 + base + lax.broadcasted_iota(jnp.int32, d.shape, 0)
            d = jnp.where(rid < rows_total, d, 0.0)
        r8 = (nrows // SUBLANE) * SUBLANE
        if r8 > 0:
            acc_ref[...] += d[:r8].reshape(r8 // SUBLANE, SUBLANE, LANE).sum(axis=0)
        if nrows > r8:
            # Only reachable for tiny single-block inputs (rows % 8 != 0).
            acc_ref[0:1, :] += d[r8:].sum(axis=0, keepdims=True)

    # Chunked fold: keeps the hidden f32 temps at ~chunk*128*4 bytes instead of
    # a block-sized materialized diff (matters at 4 MiB blocks inside v7x's
    # 64 MiB VMEM).  Loop overhead is hidden under the HBM-bound DMA.
    n_full = block_rows // chunk
    if n_full > 0:
        def body(k, carry):
            accum(pl.multiple_of(k * chunk, chunk), chunk)
            return carry
        lax.fori_loop(0, n_full, body, 0)
    rem = block_rows - n_full * chunk
    if rem > 0:
        accum(n_full * chunk, rem)


def mae_criterion(pred, target, *, target_block_bytes=TARGET_BLOCK_BYTES,
                  chunk_rows=CHUNK_ROWS):
    """Equivalent of torch.mean(torch.abs(pred - target)) for arbitrary shapes."""
    assert pred.shape == target.shape, "pred/target shape mismatch"
    n_elems = pred.size
    itemsize = jnp.dtype(pred.dtype).itemsize

    pred_flat = jnp.ravel(pred)
    target_flat = jnp.ravel(target)

    rows_total = n_elems // LANE          # full 128-lane rows (aligned prefix)
    n_aligned = rows_total * LANE
    tail = n_elems - n_aligned

    # <128-element tail handled as a tiny wrapper-side correction instead of a
    # full-array pad copy (review: the pad path was ~2-3x min HBM traffic).
    if tail:
        tail_sum = jnp.sum(
            jnp.abs(pred_flat[n_aligned:].astype(jnp.float32)
                    - target_flat[n_aligned:].astype(jnp.float32)))
    else:
        tail_sum = jnp.float32(0.0)

    if rows_total == 0:
        # Fewer than 128 elements: not worth a kernel launch.
        return (tail_sum / n_elems).astype(jnp.float32)

    # Aligned inputs (the common case): ravel + reshape is a free bitcast.
    # TODO(synk): for lane-misaligned inputs XLA may still materialize this
    # prefix slice as a copy; rare for NN tensors, acceptable.
    pred2d = pred_flat[:n_aligned].reshape(rows_total, LANE)
    target2d = target_flat[:n_aligned].reshape(rows_total, LANE)

    # Bytes-based row tile (~4 MiB per input block), chunk/sublane aligned.
    row_tile = max(SUBLANE, target_block_bytes // (LANE * itemsize))
    if row_tile >= chunk_rows:
        row_tile = (row_tile // chunk_rows) * chunk_rows
    else:
        row_tile = (row_tile // SUBLANE) * SUBLANE

    if rows_total <= row_tile:
        block_rows = rows_total       # single block == full array dims (always legal)
        total_blocks = 1
    else:
        block_rows = row_tile
        total_blocks = pl.cdiv(rows_total, row_tile)

    # Leading "parallel" axis: 2-way row-block split across v7x's two
    # TensorCores; a harmless sequential loop on 1-TC v5e/v6e.
    num_splits = 2 if total_blocks >= 2 else 1
    blocks_per_core = pl.cdiv(total_blocks, num_splits)
    covered_rows = num_splits * blocks_per_core * block_rows
    need_row_mask = covered_rows != rows_total

    def in_index_map(c, i):
        # Clamp so the possibly out-of-range duplicate block of the 2-way
        # split never issues an OOB DMA; its rows are masked out in-kernel.
        return (jnp.minimum(c * blocks_per_core + i, total_blocks - 1), 0)

    kernel = functools.partial(
        _mae_partial_sum_kernel,
        chunk=chunk_rows,
        rows_total=rows_total,
        blocks_per_core=blocks_per_core,
        need_row_mask=need_row_mask,
    )

    block_bytes = block_rows * LANE * itemsize
    # 2 inputs x 2 pipeline buffers + chunk temps/headroom.  Raised explicitly
    # so 4 MiB blocks compile on v5e (16 MiB default scoped VMEM); capped well
    # below v7x's 64 MiB physical VMEM.
    vmem_limit_bytes = int(min(max(16 << 20, 4 * block_bytes + (8 << 20)), 48 << 20))

    cost = pl.CostEstimate(
        flops=2 * n_elems,
        transcendentals=0,
        bytes_accessed=2 * n_elems * itemsize + num_splits * SUBLANE * LANE * 4,
    )

    partials = pl.pallas_call(
        kernel,
        out_shape=jax.ShapeDtypeStruct((num_splits * SUBLANE, LANE), jnp.float32),
        grid_spec=pltpu.PrefetchScalarGridSpec(
            num_scalar_prefetch=0,
            grid=(num_splits, blocks_per_core),
            in_specs=[
                pl.BlockSpec((block_rows, LANE), in_index_map),
                pl.BlockSpec((block_rows, LANE), in_index_map),
            ],
            # One (8,128) partial-sum block per core split; constant across the
            # inner axis -> acts as the resident accumulator.
            out_specs=pl.BlockSpec((SUBLANE, LANE), lambda c, i: (c, 0)),
        ),
        compiler_params=pltpu.CompilerParams(
            dimension_semantics=("parallel", "arbitrary"),
            vmem_limit_bytes=vmem_limit_bytes,
        ),
        cost_estimate=cost,
    )(pred2d, target2d)

    # Tiny wrapper-side finalize: reduce the per-core (8,128) partials, add the
    # misaligned tail, scale by 1/n.  Reduction is done in f32.
    return ((jnp.sum(partials) + tail_sum) / n_elems).astype(jnp.float32)


if __name__ == "__main__":
    key = jax.random.PRNGKey(0)
    keys = jax.random.split(key, 8)

    # 1) Primary case: lane-aligned input, single block, grid (1, 1).
    pred = jax.random.normal(keys[0], (2, 4, 16, 16), dtype=jnp.float32)
    target = jax.random.normal(keys[1], (2, 4, 16, 16), dtype=jnp.float32)
    out = mae_criterion(pred, target)
    jax.block_until_ready(out)
    ref = jnp.mean(jnp.abs(pred - target))
    assert jnp.allclose(out, ref, rtol=1e-5, atol=1e-6), (out, ref)

    # 2) Multi-block + 2-way core split, even block count (no row mask).
    out2 = mae_criterion(pred, target, target_block_bytes=8 * LANE * 4)
    jax.block_until_ready(out2)
    assert jnp.allclose(out2, ref, rtol=1e-5, atol=1e-6), (out2, ref)

    # 3) Odd block count: second core gets a clamped, fully-masked duplicate block.
    pred3 = jax.random.normal(keys[2], (24, 128), dtype=jnp.float32)
    target3 = jax.random.normal(keys[3], (24, 128), dtype=jnp.float32)
    out3 = mae_criterion(pred3, target3, target_block_bytes=8 * LANE * 4)
    jax.block_until_ready(out3)
    ref3 = jnp.mean(jnp.abs(pred3 - target3))
    assert jnp.allclose(out3, ref3, rtol=1e-5, atol=1e-6), (out3, ref3)

    # 4) Lane-misaligned element count: aligned-prefix kernel + wrapper tail
    #    correction, plus a ragged (row-masked) last block.
    pred4 = jax.random.normal(keys[4], (3, 5, 113), dtype=jnp.float32)
    target4 = jax.random.normal(keys[5], (3, 5, 113), dtype=jnp.float32)
    out4 = mae_criterion(pred4, target4, target_block_bytes=8 * LANE * 4)
    jax.block_until_ready(out4)
    ref4 = jnp.mean(jnp.abs(pred4 - target4))
    assert jnp.allclose(out4, ref4, rtol=1e-5, atol=1e-6), (out4, ref4)

    # 5) Single block large enough to exercise the chunked fori_loop fold
    #    (two full 512-row chunks + a 256-row static remainder chunk).
    pred5 = jax.random.normal(keys[6], (1280, 128), dtype=jnp.float32)
    target5 = jax.random.normal(keys[7], (1280, 128), dtype=jnp.float32)
    out5 = mae_criterion(pred5, target5)
    jax.block_until_ready(out5)
    ref5 = jnp.mean(jnp.abs(pred5 - target5))
    assert jnp.allclose(out5, ref5, rtol=1e-5, atol=1e-6), (out5, ref5)

    print("KERNEL_OK")
</pallas_src>

<mosaic_0001>
module attributes {stable_mosaic.version = 11 : i64} {
  func.func @_mae_partial_sum_kernel(%arg0: i32, %arg1: i32, %arg2: memref<16x128xf32, #tpu.memory_space<vmem>>, %arg3: memref<16x128xf32, #tpu.memory_space<vmem>>, %arg4: memref<8x128xf32, #tpu.memory_space<vmem>>) attributes {dimension_semantics = [#tpu.dimension_semantics<parallel>, #tpu.dimension_semantics<arbitrary>], iteration_bounds = array<i64: 1, 1>, scalar_prefetch = 0 : i64, scratch_operands = 0 : i64, tpu.core_type = #tpu.core_type<tc>, window_params = [{transform_indices = @transform_0, window_bounds = array<i64: 16, 128>}, {transform_indices = @transform_1, window_bounds = array<i64: 16, 128>}, {transform_indices = @transform_2, window_bounds = array<i64: 8, 128>}]} {
    %c0_i32 = arith.constant 0 : i32
    %0 = arith.cmpi eq, %arg1, %c0_i32 : i32
    %1 = arith.extui %0 : i1 to i32
    %c0_i32_0 = arith.constant 0 : i32
    %2 = arith.cmpi ne, %1, %c0_i32_0 : i32
    scf.if %2 {
      %cst_8 = arith.constant 0.000000e+00 : f32
      %12 = vector.broadcast %cst_8 : f32 to vector<8x128xf32>
      %c0_9 = arith.constant 0 : index
      %c0_10 = arith.constant 0 : index
      %13 = vector.load %arg4[%c0_9, %c0_10] : memref<8x128xf32, #tpu.memory_space<vmem>>, vector<8x128xf32>
      tpu.vector_store %arg4[%c0_9, %c0_10], %12 {strides = array<i32>} : memref<8x128xf32, #tpu.memory_space<vmem>>, vector<8x128xf32>,
    } else {
    }
    %c0 = arith.constant 0 : index
    %c0_1 = arith.constant 0 : index
    %3 = vector.load %arg2[%c0, %c0_1] : memref<16x128xf32, #tpu.memory_space<vmem>>, vector<16x128xf32>
    %c0_2 = arith.constant 0 : index
    %c0_3 = arith.constant 0 : index
    %4 = vector.load %arg3[%c0_2, %c0_3] : memref<16x128xf32, #tpu.memory_space<vmem>>, vector<16x128xf32>
    %5 = arith.subf %3, %4 : vector<16x128xf32>
    %6 = math.absf %5 : vector<16x128xf32>
    %c0_4 = arith.constant 0 : index
    %c0_5 = arith.constant 0 : index
    %7 = vector.load %arg4[%c0_4, %c0_5] : memref<8x128xf32, #tpu.memory_space<vmem>>, vector<8x128xf32>
    %8 = vector.shape_cast %6 : vector<16x128xf32> to vector<2x8x128xf32>
    %cst = arith.constant dense<0.000000e+00> : vector<8x128xf32>
    %9 = vector.multi_reduction <add>, %8, %cst [0] : vector<2x8x128xf32> to vector<8x128xf32>
    %10 = arith.addf %7, %9 : vector<8x128xf32>
    %c0_6 = arith.constant 0 : index
    %c0_7 = arith.constant 0 : index
    %11 = vector.load %arg4[%c0_6, %c0_7] : memref<8x128xf32, #tpu.memory_space<vmem>>, vector<8x128xf32>
    tpu.vector_store %arg4[%c0_6, %c0_7], %10 {strides = array<i32>} : memref<8x128xf32, #tpu.memory_space<vmem>>, vector<8x128xf32>,
    return
  }
  func.func @transform_0(%arg0: i32, %arg1: i32) -> (i32, i32) {
    %c1_i32 = arith.constant 1 : i32
    %0 = arith.muli %arg0, %c1_i32 : i32
    %1 = arith.addi %0, %arg1 : i32
    %c0_i32 = arith.constant 0 : i32
    %2 = arith.minsi %1, %c0_i32 : i32
    %c0_i32_0 = arith.constant 0 : i32
    %c0_i32_1 = arith.constant 0 : i32
    return %2, %c0_i32_0 : i32, i32
  }
  func.func @transform_1(%arg0: i32, %arg1: i32) -> (i32, i32) {
    %c1_i32 = arith.constant 1 : i32
    %0 = arith.muli %arg0, %c1_i32 : i32
    %1 = arith.addi %0, %arg1 : i32
    %c0_i32 = arith.constant 0 : i32
    %2 = arith.minsi %1, %c0_i32 : i32
    %c0_i32_0 = arith.constant 0 : i32
    %c0_i32_1 = arith.constant 0 : i32
    return %2, %c0_i32_0 : i32, i32
  }
  func.func @transform_2(%arg0: i32, %arg1: i32) -> (i32, i32) {
    %c0_i32 = arith.constant 0 : i32
    %c0_i32_0 = arith.constant 0 : i32
    return %arg0, %c0_i32 : i32, i32
  }
}

</mosaic_0001>

<llo_original>
// kernel: tpu_custom_call.1
$region0: #{tpu_custom_call.1}
  #allocation0 [shape = 'u32[]', space=smem, size = 0x4, offset = 0x4, fixed_abs, tag = 'smem constant byte address 0x4 - core index']
  #allocation1 [shape = 'u32[144,128]{1,0:T(1,128)}', space=vmem, size = 0x12000, scoped, tag = 'internal scratch']
  %s0 = inlined_call_operand.hbm [shape: f32[16,128], index: 0, kind: input, shape index: {}]
  %s1 = inlined_call_operand.hbm [shape: f32[16,128], index: 1, kind: input, shape index: {}]
  %s2 = inlined_call_operand.hbm [shape: f32[8,128], index: 2, kind: output, shape index: {}]
  %s3 = sld [smem:[#allocation0]]
  $region30: #{tpu_custom_call.1} parent=0
    _
  %s5 = ssub.s32 1, %s3
  %s6 = scalar_select 0, %s5, %s3
  $region1: #{tpu_custom_call.1} parent=0
    #allocation2 [shape = 'u8[8192]{0}', space=vmem, size = 0x2000, scoped, tag = 'input window, operand 0, single buffered']
    #allocation3 [shape = 's32[1]{0}', space=sflag, size = 0x4, scoped, tag = 'scoped memory for tpu_custom_call.1']
    #allocation4 [shape = 's32[1]{0}', space=sflag, size = 0x4, scoped, tag = 'scoped memory for tpu_custom_call.1']
    #allocation5 [shape = 'u8[8192]{0}', space=vmem, size = 0x2000, scoped, tag = 'input window, operand 1, single buffered']
    #allocation6 [shape = 's32[1]{0}', space=sflag, size = 0x4, scoped, tag = 'scoped memory for tpu_custom_call.1']
    #allocation7 [shape = 'u8[4096]{0}', space=vmem, size = 0x1000, scoped, tag = 'output window, operand 0, single buffered']
    %7 = vsyncpa [#allocation3], 0
    %8 = vsyncpa [#allocation6], 0
    %9 = vsyncpa [#allocation4], 0
    // Predicated region
    $region2: #{tpu_custom_call.1} parent=1 // pred_check
      _
    $region3: #{tpu_custom_call.1} parent=1 // pred_check_branch
      %11 = sbr.rel (0) target = $region5
    $region4: #{tpu_custom_call.1} parent=1 // pred_region
      %s12 = sadd.s32 0, 0
      %p13 = scmp.lt.s32.totalorder %s12, 0
      %s14 = scalar_select %p13, %s12, 0
      %s15 = smul.u32 2, %s14
      %s17 = ssub.s32 256, 256
      %18 = vsyncadd [#allocation3], %s17
      %s19 = smul.addr %s15, 128
      %s20 = scalar_lea.hbm %s0, %s19
      %s21 = sshll.u32 [#allocation2], 4
      %s22 = int_to_ptr.vmem [resolvable:$true] %s21
      %27 = dma.hbm_to_vmem [thread:$0]  %s20, 256, %s22, [#allocation3], 128, 128, 8
    $region5: #{tpu_custom_call.1} parent=1 // pred_fallthru
      _
    // Predicated region
    $region6: #{tpu_custom_call.1} parent=1 // pred_check
      _
    $region7: #{tpu_custom_call.1} parent=1 // pred_check_branch
      %29 = sbr.rel (0) target = $region9
    $region8: #{tpu_custom_call.1} parent=1 // pred_region
      %s30 = sadd.s32 0, 0
      %p31 = scmp.lt.s32.totalorder %s30, 0
      %s32 = scalar_select %p31, %s30, 0
      %s33 = smul.u32 2, %s32
      %s35 = ssub.s32 256, 256
      %36 = vsyncadd [#allocation6], %s35
      %s37 = smul.addr %s33, 128
      %s38 = scalar_lea.hbm %s1, %s37
      %s39 = sshll.u32 [#allocation5], 4
      %s40 = int_to_ptr.vmem [resolvable:$true] %s39
      %45 = dma.hbm_to_vmem [thread:$0]  %s38, 256, %s40, [#allocation6], 128, 128, 8
    $region9: #{tpu_custom_call.1} parent=1 // pred_fallthru
      _
    // Predicated region
    $region10: #{tpu_custom_call.1} parent=1 // pred_check
      _
    $region11: #{tpu_custom_call.1} parent=1 // pred_check_branch
      %47 = sbr.rel (0) target = $region13
    $region12: #{tpu_custom_call.1} parent=1 // pred_region
      %48 = dma.done [#allocation3], 256
    $region13: #{tpu_custom_call.1} parent=1 // pred_fallthru
      _
    // Predicated region
    $region14: #{tpu_custom_call.1} parent=1 // pred_check
      _
    $region15: #{tpu_custom_call.1} parent=1 // pred_check_branch
      %50 = sbr.rel (0) target = $region17
    $region16: #{tpu_custom_call.1} parent=1 // pred_region
      %51 = dma.done [#allocation6], 256
    $region17: #{tpu_custom_call.1} parent=1 // pred_fallthru
      _
    %s52 = sadd.s32 0, 0
    %p53 = scmp.lt.s32.totalorder %s52, 0
    %s54 = scalar_select %p53, %s52, 0
    %s55 = smul.u32 2, %s54
    %s56 = sadd.s32 0, 0
    %p57 = scmp.lt.s32.totalorder %s56, 0
    %s58 = scalar_select %p57, %s56, 0
    %s59 = smul.u32 2, %s58
    %p60 = scmp.eq.s32.totalorder 0, 0
    // Predicated region
    $region18: #{tpu_custom_call.1} parent=1 // pred_check
      %p61 = pneg %p60
    $region19: #{tpu_custom_call.1} parent=1 // pred_check_branch
      %63 = sbr.rel (%p61) target = $region21
    $region20: #{tpu_custom_call.1} parent=1 // pred_region
      %64 = vst [vmem:[#allocation7] sm:$0xff] 0.0
    $region21: #{tpu_custom_call.1} parent=1 // pred_fallthru
      _
    %v65 = vld [vmem:[#allocation2] sm:$0xff]
    %v66 = vld [vmem:[#allocation2 + $0x8] sm:$0xff]
    %v67 = vld [vmem:[#allocation5] sm:$0xff]
    %v68 = vld [vmem:[#allocation5 + $0x8] sm:$0xff]
    %v69 = vsub.f32 %v65, %v67
    %v70 = vsub.f32 %v66, %v68
    %v71 = vand.u32 2147483647, %v69
    %v72 = vand.u32 2147483647, %v70
    %v73 = vld [vmem:[#allocation7] sm:$0xff]
    %v74 = vadd.f32 %v71, %v72
    %v75 = vadd.f32 %v73, %v74
    %76 = vst [vmem:[#allocation7] sm:$0xff] %v75
    // Predicated region
    $region22: #{tpu_custom_call.1} parent=1 // pred_check
      _
    $region23: #{tpu_custom_call.1} parent=1 // pred_check_branch
      %78 = sbr.rel (0) target = $region25
    $region24: #{tpu_custom_call.1} parent=1 // pred_region
      %s80 = ssub.s32 128, 128
      %81 = vsyncadd [#allocation4], %s80
      %s83 = sshll.u32 [#allocation7], 4
      %s84 = int_to_ptr.vmem [resolvable:$true] %s83
      %86 = dma.vmem_to_hbm [thread:$0]  %s84, 128, %s2, [#allocation4]
    $region25: #{tpu_custom_call.1} parent=1 // pred_fallthru
      _
    // Predicated region
    $region26: #{tpu_custom_call.1} parent=1 // pred_check
      _
    $region27: #{tpu_custom_call.1} parent=1 // pred_check_branch
      %88 = sbr.rel (0) target = $region29
    $region28: #{tpu_custom_call.1} parent=1 // pred_region
      %89 = dma.done [#allocation4], 128
    $region29: #{tpu_custom_call.1} parent=1 // pred_fallthru
      _
    %90 = vsyncpa [#allocation3], 1
    %91 = vsyncpa [#allocation6], 1
    %92 = vsyncpa [#allocation4], 1

</llo_original>
